<compile_context>
chip_gen: v7x
topology: tpu7x:2x2x1
jax: 0.10.0
libtpu: 0.0.40
codegen_flags: <defaults>
</compile_context>

<pallas_src>
import jax
import jax.numpy as jnp
from jax.experimental import pallas as pl
from jax.experimental.pallas import tpu as pltpu


# --------------------------------------------------------------------------- #
# Primary: aliased no-op (zero HBM traffic, zero VMEM usage).
# --------------------------------------------------------------------------- #
def _identity_alias_kernel(x_hbm_ref, o_hbm_ref):
    # Output buffer IS the input buffer (input_output_aliases={0: 0}) and both
    # live in HBM (memory_space=pl.ANY), so there is nothing to move or compute.
    del x_hbm_ref, o_hbm_ref


def identity(x: jax.Array) -> jax.Array:
    """Pallas implementation of Identity.forward(x) -> x as a no-op via aliasing."""
    return pl.pallas_call(
        _identity_alias_kernel,
        out_shape=jax.ShapeDtypeStruct(x.shape, x.dtype),
        in_specs=[pl.BlockSpec(memory_space=pl.ANY)],
        out_specs=pl.BlockSpec(memory_space=pl.ANY),
        input_output_aliases={0: 0},
    )(x)


# --------------------------------------------------------------------------- #
# Secondary: single DMA-engine HBM->HBM copy into a fresh output buffer.
# --------------------------------------------------------------------------- #
def _identity_copy_kernel(x_hbm_ref, o_hbm_ref, sem):
    cp = pltpu.make_async_copy(x_hbm_ref, o_hbm_ref, sem)
    cp.start()
    cp.wait()


def identity_copy(x: jax.Array) -> jax.Array:
    """Identity that materializes a distinct output buffer via one HBM->HBM DMA."""
    return pl.pallas_call(
        _identity_copy_kernel,
        out_shape=jax.ShapeDtypeStruct(x.shape, x.dtype),
        in_specs=[pl.BlockSpec(memory_space=pl.ANY)],
        out_specs=pl.BlockSpec(memory_space=pl.ANY),
        scratch_shapes=[pltpu.SemaphoreType.DMA],
        compiler_params=pltpu.CompilerParams(has_side_effects=True),
    )(x)


if __name__ == "__main__":
    key = jax.random.PRNGKey(0)
    # Small example input consistent with an augmentation on batched data.
    x = jax.random.normal(key, (2, 4, 16, 16), dtype=jnp.float32)

    # Primary (aliased no-op) path.
    y = identity(x)
    jax.block_until_ready(y)
    assert y.shape == x.shape, f"shape mismatch: {y.shape} vs {x.shape}"
    assert y.dtype == x.dtype, f"dtype mismatch: {y.dtype} vs {x.dtype}"
    assert bool(jnp.array_equal(y, x)), "values differ from identity (aliased path)"

    # Secondary (fresh-buffer DMA copy) path.
    y2 = identity_copy(x)
    jax.block_until_ready(y2)
    assert y2.shape == x.shape, f"shape mismatch: {y2.shape} vs {x.shape}"
    assert y2.dtype == x.dtype, f"dtype mismatch: {y2.dtype} vs {x.dtype}"
    assert bool(jnp.array_equal(y2, x)), "values differ from identity (copy path)"

    print("KERNEL_OK")
</pallas_src>

<mosaic_0001>
module attributes {stable_mosaic.version = 11 : i64} {
  func.func @_identity_alias_kernel(%arg0: memref<2x4x16x16xf32, #tpu.memory_space<any>>, %arg1: memref<2x4x16x16xf32, #tpu.memory_space<any>>) attributes {dimension_semantics = [], scalar_prefetch = 0 : i64, scratch_operands = 0 : i64, tpu.core_type = #tpu.core_type<tc>} {
    return
  }
}

</mosaic_0001>

<llo_original>
// kernel: tpu_custom_call.1
$region0: #{tpu_custom_call.1}
  #allocation0 [shape = 'u32[]', space=smem, size = 0x4, offset = 0x4, fixed_abs, tag = 'smem constant byte address 0x4 - core index']
  #allocation1 [shape = 'u32[144,128]{1,0:T(1,128)}', space=vmem, size = 0x12000, scoped, tag = 'internal scratch']
  %s0 = inlined_call_operand.hbm [shape: f32[2,4,16,16], index: 0, kind: input, shape index: {}, may-alias: {0,1}]
  %s1 = inlined_call_operand.hbm [shape: f32[2,4,16,16], index: 1, kind: output, shape index: {}, may-alias: {0,1}]
  %s2 = sld [smem:[#allocation0]]
  $region2: #{tpu_custom_call.1} parent=0
    _
  %s4 = ssub.s32 1, %s2
  %s5 = scalar_select 0, %s4, %s2

</llo_original>
